<compile_context>
chip_gen: v7x
topology: tpu7x:2x2x1
jax: 0.10.0
libtpu: 0.0.40
codegen_flags: <defaults>
</compile_context>

<pallas_src>
from functools import partial

import jax
import jax.numpy as jnp
from jax.experimental import pallas as pl
from jax.experimental.pallas import tpu as pltpu

_VMEM_LIMIT_BYTES = 48 * 1024 * 1024  # > 16/32 MiB scoped defaults, < v7x 64 MiB


def _round_up(x, m):
    return -(-x // m) * m


# ---------------------------------------------------------------------------
# Kernel 1: fused 1x1 conv (virtual channel concat) + bias + SiLU
# ---------------------------------------------------------------------------
def _make_pw_kernel(c_each):
    """SiLU( [x_0 | ... | x_{n-1}] @ W + b ) on one (tm, Cout) output tile.

    For n_in > 1 the channel slices are copied into ONE contiguous bf16 VMEM
    scratch so a single K = sum(c_each) matmul keeps the accumulation inside
    the MXU (no chained f32 adds / extra (tm, Cout) temporaries on the VPU).
    """
    n_in = len(c_each)
    offs = [0]
    for c in c_each:
        offs.append(offs[-1] + c)

    def _silu(y):
        # exp and approx reciprocal both ride the EUP slot (slack next to MXU).
        return y * pl.reciprocal(1.0 + jnp.exp(-y), approx=True)

    if n_in == 1:
        def kernel(x_ref, w_ref, b_ref, o_ref):
            y = jnp.dot(x_ref[...], w_ref[...],
                        preferred_element_type=jnp.float32) + b_ref[...]
            o_ref[...] = _silu(y).astype(o_ref.dtype)
        return kernel

    def kernel(*refs):
        x_refs = refs[:n_in]
        w_ref, b_ref, o_ref, cat_ref = refs[n_in:n_in + 4]
        for j in range(n_in):
            cat_ref[:, offs[j]:offs[j + 1]] = x_refs[j][...]
        y = jnp.dot(cat_ref[...], w_ref[...],
                    preferred_element_type=jnp.float32) + b_ref[...]
        o_ref[...] = _silu(y).astype(o_ref.dtype)

    return kernel


def _pick_tm(M, target=1024):
    """Pick an M tile that divides M when possible (avoids an HBM pad copy)."""
    if M <= target:
        tm = M
    else:
        tm = 0
        t = 8
        while t <= target:           # largest multiple-of-8 divisor <= target
            if M % t == 0:
                tm = t
            t += 8
        if tm == 0:                  # ragged M with no nice divisor:
            tm = target              # rare fallback -> pad in the wrapper.
    Mp = _round_up(M, tm)
    # v7x has two TensorCores: keep >= 2 'parallel' grid steps when cheap.
    if Mp // tm == 1 and tm % 16 == 0 and tm >= 256:
        tm //= 2
    return tm, Mp


def pointwise_conv_bn_silu(xs, w, bias, *, out_dtype=jnp.bfloat16, tm_target=1024):
    """SiLU( concat(xs, axis=1) @ w + bias ) without materializing the concat.

    xs:   list of (M, Ci) bf16 arrays (channel slices of the conv input).
    w:    (sum(Ci), Cout) bf16 weights with the BN scale folded in.
    bias: (Cout,) f32 folded BN bias.
    """
    n_in = len(xs)
    M = xs[0].shape[0]
    c_each = [int(xx.shape[1]) for xx in xs]
    Ktot = sum(c_each)
    Cout = w.shape[1]
    assert w.shape[0] == Ktot

    tm, Mp = _pick_tm(M, tm_target)
    if Mp != M:
        # Rare fallback (extra HBM copy); _pick_tm avoids it whenever M has a
        # multiple-of-8 divisor <= tm_target.
        xs = [jnp.pad(xx, ((0, Mp - M), (0, 0))) for xx in xs]

    in_specs = (
        [pl.BlockSpec((tm, c), lambda i: (i, 0)) for c in c_each]
        # Constant index maps -> weights/bias stay resident across grid steps.
        + [pl.BlockSpec((Ktot, Cout), lambda i: (0, 0)),
           pl.BlockSpec((1, Cout), lambda i: (0, 0))]
    )
    scratch = [pltpu.VMEM((tm, Ktot), jnp.bfloat16)] if n_in > 1 else []

    out = pl.pallas_call(
        _make_pw_kernel(c_each),
        out_shape=jax.ShapeDtypeStruct((Mp, Cout), out_dtype),
        grid_spec=pltpu.PrefetchScalarGridSpec(
            num_scalar_prefetch=0,
            grid=(Mp // tm,),
            in_specs=in_specs,
            out_specs=pl.BlockSpec((tm, Cout), lambda i: (i, 0)),
            scratch_shapes=scratch,
        ),
        compiler_params=pltpu.CompilerParams(
            dimension_semantics=("parallel",),
            vmem_limit_bytes=_VMEM_LIMIT_BYTES),
    )(*xs, w, bias.reshape(1, Cout).astype(jnp.float32))

    return out[:M] if Mp != M else out


# ---------------------------------------------------------------------------
# Kernel 2: cascaded 5x5 max pools (== k = 5, 9, 13), channels-last, fused.
# Scratch padded along H only (aligned shifts); W pass via roll + mask.
# ---------------------------------------------------------------------------
def _spp_pool_kernel(x_ref, p5_ref, p9_ref, p13_ref, pad_ref, *, k):
    _, H, W, tc = x_ref.shape
    p = k // 2

    # -inf border ROWS only (top/bottom p rows); interior rewritten per stage.
    border = jnp.full((p, W, tc), -jnp.inf, dtype=pad_ref.dtype)
    pad_ref[0:p, :, :] = border
    pad_ref[p + H:p + H + p, :, :] = border

    # Sublane (W) index + boundary masks, hoisted out of the cascade loop.
    w_idx = jax.lax.broadcasted_iota(jnp.int32, (H, W, tc), 1)
    left_ok = [w_idx >= dw for dw in range(1, p + 1)]        # access m[w - dw]
    right_ok = [w_idx < W - dw for dw in range(1, p + 1)]    # access m[w + dw]

    cur = x_ref[0]                                           # (H, W, tc) bf16
    for out_ref in (p5_ref, p9_ref, p13_ref):                # cascade 5 -> 9 -> 13
        pad_ref[p:p + H, :, :] = cur                         # aligned full-row store
        # Row (H) pass: aligned outer-dim shifts of the H-padded scratch.
        m = pad_ref[0:H, :, :]
        for dh in range(1, k):
            m = jnp.maximum(m, pad_ref[dh:dh + H, :, :])
        # Column (W) pass: XLU sublane rotations + boundary masks
        # (no misaligned sublane loads, no masked partial stores).
        res = m
        for dw in range(1, p + 1):
            left = pltpu.roll(m, shift=dw, axis=1)           # m[w - dw] at w
            right = pltpu.roll(m, shift=(W - dw) % W, axis=1)  # m[w + dw] at w
            res = jnp.maximum(res, jnp.where(left_ok[dw - 1], left, -jnp.inf))
            res = jnp.maximum(res, jnp.where(right_ok[dw - 1], right, -jnp.inf))
        out_ref[0] = res.astype(out_ref.dtype)
        cur = res                                            # feed next stage


def _choose_tc(C, N, cap=256):
    if C <= cap:
        tc = C
    elif C % cap == 0:
        tc = cap
    elif C % 128 == 0:
        tc = 128
    else:
        tc = C          # compiler pads lanes; correct but wasteful.
    # v7x megacore: with batch 1 keep >= 2 grid steps if it stays lane-aligned.
    if N == 1 and C // tc == 1 and C % 256 == 0:
        tc = C // 2
    return tc


def spp_cascaded_maxpool(x1_nhwc, ks):
    """Returns (pool5, pool9, pool13) of x1, each stride-1 same-size max pool."""
    k0 = ks[0]
    expected = tuple((i + 1) * (k0 - 1) + 1 for i in range(len(ks)))
    if len(ks) != 3 or tuple(ks) != expected:
        # TODO(synk): non-cascadable k lists would need independent pool kernels.
        raise NotImplementedError(f"cascaded pooling requires ks == {expected}")

    N, H, W, C = x1_nhwc.shape
    p = k0 // 2
    tc = _choose_tc(C, N)
    spec = pl.BlockSpec((1, H, W, tc), lambda n, c: (n, 0, 0, c))
    out_sd = jax.ShapeDtypeStruct((N, H, W, C), x1_nhwc.dtype)

    # TODO(synk): for very large H*W maps, tile H with a (k0-1)//2 halo so the
    # bf16 scratch + three double-buffered outputs stay inside v7x's 64 MiB VMEM.
    return pl.pallas_call(
        partial(_spp_pool_kernel, k=k0),
        out_shape=(out_sd, out_sd, out_sd),
        grid_spec=pltpu.PrefetchScalarGridSpec(
            num_scalar_prefetch=0,
            grid=(N, C // tc),
            in_specs=[spec],
            out_specs=(spec, spec, spec),
            scratch_shapes=[pltpu.VMEM((H + 2 * p, W, tc), x1_nhwc.dtype)],
        ),
        compiler_params=pltpu.CompilerParams(
            dimension_semantics=("parallel", "parallel"),
            vmem_limit_bytes=_VMEM_LIMIT_BYTES),
    )(x1_nhwc)


# ---------------------------------------------------------------------------
# SPP module: params + forward
# ---------------------------------------------------------------------------
def _bn_fold(key, c, eps=1e-3):
    kg, kb, km, kv = jax.random.split(key, 4)
    gamma = 1.0 + 0.1 * jax.random.normal(kg, (c,), dtype=jnp.float32)
    beta = 0.1 * jax.random.normal(kb, (c,), dtype=jnp.float32)
    mean = 0.1 * jax.random.normal(km, (c,), dtype=jnp.float32)
    var = jax.random.uniform(kv, (c,), minval=0.5, maxval=1.5, dtype=jnp.float32)
    scale = gamma / jnp.sqrt(var + eps)
    bias = beta - mean * scale
    return scale, bias


def make_spp_params(key, c1, c2, ks=(5, 9, 13)):
    c_ = c1 // 2
    k1, k2, k3, k4 = jax.random.split(key, 4)
    w1 = 0.1 * jax.random.normal(k1, (c_, c1), dtype=jnp.float32)                  # cv1 (Cout, Cin)
    s1, b1 = _bn_fold(k3, c_)
    w2 = 0.1 * jax.random.normal(k2, (c2, c_ * (len(ks) + 1)), dtype=jnp.float32)  # cv2
    s2, b2 = _bn_fold(k4, c2)
    return dict(w1=w1, s1=s1, b1=b1, w2=w2, s2=s2, b2=b2, ks=tuple(ks))


def spp_forward(params, x):
    """x: (N, C1, H, W) float32  ->  (N, C2, H, W) float32."""
    N, C1, H, W = x.shape
    c_ = params["w1"].shape[0]
    c2 = params["w2"].shape[0]

    # Fold BN scale into the conv weights (wrapper side, negligible), cast bf16.
    w1f = (params["w1"] * params["s1"][:, None]).T.astype(jnp.bfloat16)   # (C1, c_)
    b1f = params["b1"].astype(jnp.float32)
    w2f = (params["w2"] * params["s2"][:, None]).T.astype(jnp.bfloat16)   # (4c_, c2)
    b2f = params["b2"].astype(jnp.float32)

    # Single layout pass: NCHW -> NHWC (+ bf16 cast), flattened to (M, C1).
    x_flat = jnp.transpose(x, (0, 2, 3, 1)).astype(jnp.bfloat16).reshape(N * H * W, C1)

    # cv1: 1x1 conv + BN + SiLU (fused).
    x1_flat = pointwise_conv_bn_silu([x_flat], w1f, b1f, out_dtype=jnp.bfloat16)
    x1 = x1_flat.reshape(N, H, W, c_)

    # Cascaded 5x5 max pools == pools with k = 5, 9, 13 (single fused kernel).
    p5, p9, p13 = spp_cascaded_maxpool(x1, params["ks"])

    # cv2 over the virtual concat [x1, p5, p9, p13]; the (M, 4c_) concat is
    # only ever assembled tile-by-tile in VMEM, never in HBM.
    # TODO(synk): cv2 could be fused into the pool kernel (per-stage partial
    # matmuls into an f32 accumulator) to avoid writing/re-reading p5/p9/p13.
    xs = [x1_flat, p5.reshape(-1, c_), p9.reshape(-1, c_), p13.reshape(-1, c_)]
    out_flat = pointwise_conv_bn_silu(xs, w2f, b2f, out_dtype=jnp.float32)

    # Single layout pass back: NHWC -> NCHW.
    return jnp.transpose(out_flat.reshape(N, H, W, c2), (0, 3, 1, 2))


# ---------------------------------------------------------------------------
# Pure-JAX reference (for correctness check)
# ---------------------------------------------------------------------------
def _ref_pw(x, w, s, b):
    y = jnp.einsum("nchw,oc->nohw", x, w)
    y = y * s[None, :, None, None] + b[None, :, None, None]
    return y * jax.nn.sigmoid(y)


def _ref_maxpool(x, k):
    p = k // 2
    return jax.lax.reduce_window(
        x, -jnp.inf, jax.lax.max,
        window_dimensions=(1, 1, k, k), window_strides=(1, 1, 1, 1),
        padding=((0, 0), (0, 0), (p, p), (p, p)))


def spp_reference(params, x):
    x1 = _ref_pw(x, params["w1"], params["s1"], params["b1"])
    cat = jnp.concatenate([x1] + [_ref_maxpool(x1, k) for k in params["ks"]], axis=1)
    return _ref_pw(cat, params["w2"], params["s2"], params["b2"])


if __name__ == "__main__":
    key = jax.random.PRNGKey(0)
    kx, kp = jax.random.split(key)

    N, C1, H, W = 2, 4, 16, 16
    C2 = 4
    x = jax.random.normal(kx, (N, C1, H, W), dtype=jnp.float32)
    params = make_spp_params(kp, C1, C2)

    out = jax.block_until_ready(spp_forward(params, x))
    assert out.shape == (N, C2, H, W), out.shape

    ref = jax.block_until_ready(spp_reference(params, x))
    # bf16 activations/weights in the Pallas path -> loosened tolerance.
    assert jnp.allclose(out, ref, rtol=3e-2, atol=3e-2), "mismatch vs reference"

    print("KERNEL_OK")
</pallas_src>

<mosaic_0001>
module attributes {stable_mosaic.version = 11 : i64} {
  func.func @kernel(%arg0: i32, %arg1: memref<256x4xbf16, #tpu.memory_space<vmem>>, %arg2: memref<4x2xbf16, #tpu.memory_space<vmem>>, %arg3: memref<1x2xf32, #tpu.memory_space<vmem>>, %arg4: memref<256x2xbf16, #tpu.memory_space<vmem>>) attributes {dimension_semantics = [#tpu.dimension_semantics<parallel>], iteration_bounds = array<i64: 2>, scalar_prefetch = 0 : i64, scratch_operands = 0 : i64, tpu.core_type = #tpu.core_type<tc>, window_params = [{transform_indices = @transform_0, window_bounds = array<i64: 256, 4>}, {pipeline_mode = #tpu.pipeline_mode<synchronous>, transform_indices = @transform_1, window_bounds = array<i64: 4, 2>}, {pipeline_mode = #tpu.pipeline_mode<synchronous>, transform_indices = @transform_2, window_bounds = array<i64: 1, 2>}, {transform_indices = @transform_3, window_bounds = array<i64: 256, 2>}]} {
    %c0 = arith.constant 0 : index
    %c0_0 = arith.constant 0 : index
    %0 = vector.load %arg1[%c0, %c0_0] : memref<256x4xbf16, #tpu.memory_space<vmem>>, vector<256x4xbf16>
    %c0_1 = arith.constant 0 : index
    %c0_2 = arith.constant 0 : index
    %1 = vector.load %arg2[%c0_1, %c0_2] : memref<4x2xbf16, #tpu.memory_space<vmem>>, vector<4x2xbf16>
    %cst = arith.constant dense<0.000000e+00> : vector<256x2xf32>
    %2 = tpu.matmul %0, %1, %cst {dimension_numbers = #tpu.dot_dimension_numbers<[1], [0], [0], [1], [0, 0, 1, 1], [], []>} : vector<256x4xbf16>, vector<4x2xbf16>, vector<256x2xf32> -> vector<256x2xf32>
    %c0_3 = arith.constant 0 : index
    %c0_4 = arith.constant 0 : index
    %3 = vector.load %arg3[%c0_3, %c0_4] : memref<1x2xf32, #tpu.memory_space<vmem>>, vector<1x2xf32>
    %4 = vector.broadcast %3 : vector<1x2xf32> to vector<256x2xf32>
    %5 = arith.addf %2, %4 : vector<256x2xf32>
    %cst_5 = arith.constant 0.000000e+00 : f32
    %6 = vector.broadcast %cst_5 : f32 to vector<256x2xf32>
    %7 = arith.subf %6, %5 : vector<256x2xf32>
    %8 = math.exp %7 : vector<256x2xf32>
    %cst_6 = arith.constant 1.000000e+00 : f32
    %9 = vector.broadcast %cst_6 : f32 to vector<256x2xf32>
    %10 = arith.addf %9, %8 : vector<256x2xf32>
    %11 = tpu.reciprocal %10 {approx = true} : vector<256x2xf32> -> vector<256x2xf32>
    %12 = arith.mulf %5, %11 : vector<256x2xf32>
    %13 = arith.truncf %12 : vector<256x2xf32> to vector<256x2xbf16>
    %c0_7 = arith.constant 0 : index
    %c0_8 = arith.constant 0 : index
    %14 = vector.load %arg4[%c0_7, %c0_8] : memref<256x2xbf16, #tpu.memory_space<vmem>>, vector<256x2xbf16>
    tpu.vector_store %arg4[%c0_7, %c0_8], %13 {strides = array<i32>} : memref<256x2xbf16, #tpu.memory_space<vmem>>, vector<256x2xbf16>,
    return
  }
  func.func @transform_0(%arg0: i32) -> (i32, i32) {
    %c0_i32 = arith.constant 0 : i32
    %c0_i32_0 = arith.constant 0 : i32
    return %arg0, %c0_i32 : i32, i32
  }
  func.func @transform_1(%arg0: i32) -> (i32, i32) {
    %c0_i32 = arith.constant 0 : i32
    %c0_i32_0 = arith.constant 0 : i32
    %c0_i32_1 = arith.constant 0 : i32
    return %c0_i32, %c0_i32_0 : i32, i32
  }
  func.func @transform_2(%arg0: i32) -> (i32, i32) {
    %c0_i32 = arith.constant 0 : i32
    %c0_i32_0 = arith.constant 0 : i32
    %c0_i32_1 = arith.constant 0 : i32
    return %c0_i32, %c0_i32_0 : i32, i32
  }
  func.func @transform_3(%arg0: i32) -> (i32, i32) {
    %c0_i32 = arith.constant 0 : i32
    %c0_i32_0 = arith.constant 0 : i32
    return %arg0, %c0_i32 : i32, i32
  }
}

</mosaic_0001>

<llo_original>
// kernel: tpu_custom_call.1
$region0: #{tpu_custom_call.1}
  #allocation0 [shape = 'u32[]', space=smem, size = 0x4, offset = 0x4, fixed_abs, tag = 'smem constant byte address 0x4 - core index']
  #allocation1 [shape = 'u32[144,128]{1,0:T(1,128)}', space=vmem, size = 0x12000, scoped, tag = 'internal scratch']
  %s0 = inlined_call_operand.vmem [shape: bf16[512,4], index: 0, kind: input, shape index: {}]
  %s1 = inlined_call_operand.vmem [shape: bf16[4,2], index: 1, kind: input, shape index: {}]
  %s2 = inlined_call_operand.vmem [shape: f32[1,2], index: 2, kind: input, shape index: {}]
  %s3 = inlined_call_operand.vmem [shape: bf16[512,2], index: 3, kind: output, shape index: {}]
  %s4 = sld [smem:[#allocation0]]
  $region45: #{tpu_custom_call.1} parent=0
    _
  %s6 = ssub.s32 1, %s4
  %s7 = scalar_select 0, %s6, %s4
  loop: start=0, step=1, limit=4
  $region2: #{tpu_custom_call.1} parent=0 // loop_pre_header
    _
  $region3: #{tpu_custom_call.1} parent=0 // loop_header
    %s9 = sphi 0, %s13
    %p10 = scmp.ge.s32.totalorder %s9, 4
    %s19 = sphi 0, %s21
    %s22 = sphi 0, %s19
    %s23 = sphi 0, %s22
    %s39 = sphi 0, %s23
    %s43 = sphi 0, %s43
    %s45 = sphi 0, %s43
    %s46 = sphi 0, %s45
    %s60 = sphi 0, %s46
    %s64 = sphi 0, %s64
    %s66 = sphi 0, %s64
    %s67 = sphi 0, %s66
    %s81 = sphi 0, %s67
    %s87 = sphi 0, %s89
    %s90 = sphi 0, %s87
    %s91 = sphi 0, %s90
    %s107 = sphi 0, %s91
  $region4: #{tpu_custom_call.1} parent=0 // loop_header_branch
    %12 = sbr.rel (%p10) target = $region8
  $region5: #{tpu_custom_call.1} parent=0 // loop_body
    %s14 = ssub.s32 %s9, 1
    %s15 = ssub.s32 %s9, 2
    %s16 = sadd.s32 %s9, 1
    %s17 = ssub.s32 %s9, %s16
    %p18 = scmp.eq.s32.totalorder %s17, 0
    %s20 = sadd.s32 %s19, 1
    %s21 = scalar_select %p18, %s19, %s20
    %p24 = pneg %p18
    %p25 = scmp.eq.s32.totalorder %s9, 1
    %p26 = por %p24, %p25
    %p27 = scmp.ne.s32.totalorder %s19, %s22
    %p28 = scmp.eq.s32.totalorder %s9, 0
    %p29 = por %p27, %p28
    %p30 = scmp.ne.s32.totalorder %s19, %s22
    %p31 = scmp.eq.s32.totalorder %s14, 1
    %p32 = por %p30, %p31
    %p33 = scmp.ne.s32.totalorder %s22, %s23
    %p34 = scmp.eq.s32.totalorder %s14, 0
    %p35 = por %p33, %p34
    %p36 = scmp.ne.s32.totalorder %s22, %s23
    %p37 = scmp.eq.s32.totalorder %s15, 1
    %p38 = por %p36, %p37
    %p40 = scmp.ne.s32.totalorder %s23, %s39
    %p41 = scmp.eq.s32.totalorder %s15, 0
    %p42 = por %p40, %p41
    %s44 = sadd.s32 %s43, 1
    %p47 = scmp.eq.s32.totalorder %s9, 1
    %p48 = scmp.ne.s32.totalorder %s43, %s45
    %p49 = scmp.eq.s32.totalorder %s9, 0
    %p50 = por %p48, %p49
    %p51 = scmp.ne.s32.totalorder %s43, %s45
    %p52 = scmp.eq.s32.totalorder %s14, 1
    %p53 = por %p51, %p52
    %p54 = scmp.ne.s32.totalorder %s45, %s46
    %p55 = scmp.eq.s32.totalorder %s14, 0
    %p56 = por %p54, %p55
    %p57 = scmp.ne.s32.totalorder %s45, %s46
    %p58 = scmp.eq.s32.totalorder %s15, 1
    %p59 = por %p57, %p58
    %p61 = scmp.ne.s32.totalorder %s46, %s60
    %p62 = scmp.eq.s32.totalorder %s15, 0
    %p63 = por %p61, %p62
    %s65 = sadd.s32 %s64, 1
    %p68 = scmp.eq.s32.totalorder %s9, 1
    %p69 = scmp.ne.s32.totalorder %s64, %s66
    %p70 = scmp.eq.s32.totalorder %s9, 0
    %p71 = por %p69, %p70
    %p72 = scmp.ne.s32.totalorder %s64, %s66
    %p73 = scmp.eq.s32.totalorder %s14, 1
    %p74 = por %p72, %p73
    %p75 = scmp.ne.s32.totalorder %s66, %s67
    %p76 = scmp.eq.s32.totalorder %s14, 0
    %p77 = por %p75, %p76
    %p78 = scmp.ne.s32.totalorder %s66, %s67
    %p79 = scmp.eq.s32.totalorder %s15, 1
    %p80 = por %p78, %p79
    %p82 = scmp.ne.s32.totalorder %s67, %s81
    %p83 = scmp.eq.s32.totalorder %s15, 0
    %p84 = por %p82, %p83
    %s85 = ssub.s32 %s9, %s16
    %p86 = scmp.eq.s32.totalorder %s85, 0
    %s88 = sadd.s32 %s87, 1
    %s89 = scalar_select %p86, %s87, %s88
    %p92 = pneg %p86
    %p93 = scmp.eq.s32.totalorder %s9, 1
    %p94 = por %p92, %p93
    %p95 = scmp.ne.s32.totalorder %s87, %s90
    %p96 = scmp.eq.s32.totalorder %s9, 0
    %p97 = por %p95, %p96
    %p98 = scmp.ne.s32.totalorder %s87, %s90
    %p99 = scmp.eq.s32.totalorder %s14, 1
    %p100 = por %p98, %p99
    %p101 = scmp.ne.s32.totalorder %s90, %s91
    %p102 = scmp.eq.s32.totalorder %s14, 0
    %p103 = por %p101, %p102
    %p104 = scmp.ne.s32.totalorder %s90, %s91
    %p105 = scmp.eq.s32.totalorder %s15, 1
    %p106 = por %p104, %p105
    %p108 = scmp.ne.s32.totalorder %s91, %s107
    %p109 = scmp.eq.s32.totalorder %s15, 0
    %p110 = por %p108, %p109
    %p111 = scmp.le.s32.totalorder 1, %s9
    %p112 = scmp.lt.s32.totalorder %s9, 3
    %p113 = pnand %p111, %p112
    %p114 = pneg %p113
    // Predicated region
    $region9: #{tpu_custom_call.1} parent=5 // pred_check
      _
    $region10: #{tpu_custom_call.1} parent=5 // pred_check_branch
      %116 = sbr.rel (%p113) target = $region12
    $region11: #{tpu_custom_call.1} parent=5 // pred_region
      %s117 = ssub.s32 %s9, 1
      // Predicated region
      $region13: #{tpu_custom_call.1} parent=11 // pred_check
        %p118 = pneg %p56
      $region14: #{tpu_custom_call.1} parent=11 // pred_check_branch
        %120 = sbr.rel (%p118) target = $region16
      $region15: #{tpu_custom_call.1} parent=11 // pred_region
        _
      $region16: #{tpu_custom_call.1} parent=11 // pred_fallthru
        _
      // Predicated region
      $region17: #{tpu_custom_call.1} parent=11 // pred_check
        %p121 = pneg %p77
      $region18: #{tpu_custom_call.1} parent=11 // pred_check_branch
        %123 = sbr.rel (%p121) target = $region20
      $region19: #{tpu_custom_call.1} parent=11 // pred_region
        _
      $region20: #{tpu_custom_call.1} parent=11 // pred_fallthru
        _
    $region12: #{tpu_custom_call.1} parent=5 // pred_fallthru
      _
    %p124 = scmp.lt.s32.totalorder %s9, 2
    // Predicated region
    $region21: #{tpu_custom_call.1} parent=5 // pred_check
      %p125 = pneg %p124
    $region22: #{tpu_custom_call.1} parent=5 // pred_check_branch
      %127 = sbr.rel (%p125) target = $region24
    $region23: #{tpu_custom_call.1} parent=5 // pred_region
      // Predicated region
      $region25: #{tpu_custom_call.1} parent=23 // pred_check
        %p128 = pneg %p29
      $region26: #{tpu_custom_call.1} parent=23 // pred_check_branch
        %130 = sbr.rel (%p128) target = $region28
      $region27: #{tpu_custom_call.1} parent=23 // pred_region
        %s131 = smul.u32 32, %s9
        %p132 = scmp.lt.s32.totalorder %s131, 63
        %s133 = scalar_select %p132, %s131, 63
        %s134 = smul.addr %s133, 4
        %s135 = scalar_lea.vmem %s0, %s134
        %s136 = smul.u32 32, %s9
      $region28: #{tpu_custom_call.1} parent=23 // pred_fallthru
        _
    $region24: #{tpu_custom_call.1} parent=5 // pred_fallthru
      _
    %p137 = scmp.le.s32.totalorder 1, %s9
    %p138 = scmp.lt.s32.totalorder %s9, 3
    %p139 = pnand %p137, %p138
    %p140 = pneg %p139
    // Predicated region
    $region29: #{tpu_custom_call.1} parent=5 // pred_check
      _
    $region30: #{tpu_custom_call.1} parent=5 // pred_check_branch
      %142 = sbr.rel (%p139) target = $region32
    $region31: #{tpu_custom_call.1} parent=5 // pred_region
      %s143 = ssub.s32 %s9, 1
      %s144 = smul.u32 32, %s14
      %p145 = scmp.lt.s32.totalorder %s144, 63
      %s146 = scalar_select %p145, %s144, 63
      %s147 = smul.addr %s146, 4
      %s148 = scalar_lea.vmem %s0, %s147
      %p149 = pneg %p35
      %p150 = pneg %p32
      %p151 = pneg %p56
      %p152 = pneg %p53
      %p153 = pneg %p77
      %p154 = pneg %p74
      %p155 = pneg %p103
      %p156 = pneg %p100
      %s157 = smul.u32 32, %s14
      %p158 = scmp.lt.s32.totalorder %s157, 63
      %s159 = scalar_select %p158, %s157, 63
      %s160 = smul.addr %s159, 4
      %s161 = scalar_lea.vmem %s3, %s160
      %s162 = smul.u32 32, %s14
      %p163 = scmp.lt.s32.totalorder %s162, 63
      %s164 = scalar_select %p163, %s162, 63
      %s165 = smul.addr %s164, 4
      %s166 = scalar_lea.vmem %s0, %s165
      %s167 = smul.u32 32, %s14
      %s168 = smul.u32 32, %s14
      %p169 = scmp.lt.s32.totalorder %s168, 63
      %s170 = scalar_select %p169, %s168, 63
      %s171 = smul.addr %s170, 4
      %s172 = scalar_lea.vmem %s3, %s171
      %s173 = smul.u32 32, %s14
      %v175 = vld [vmem:[%s166] sm:$0xf]
      %v176 = vld [vmem:[%s166 + $0x4] sm:$0xf]
      %v177 = vld [vmem:[%s166 + $0x8] sm:$0xf]
      %v178 = vld [vmem:[%s166 + $0xc] sm:$0xf]
      %v179 = vld [vmem:[%s166 + $0x10] sm:$0xf]
      %v180 = vld [vmem:[%s166 + $0x14] sm:$0xf]
      %v181 = vld [vmem:[%s166 + $0x18] sm:$0xf]
      %v182 = vld [vmem:[%s166 + $0x1c] sm:$0xf]
      %v183 = vld [vmem:[%s166 + $0x20] sm:$0xf]
      %v184 = vld [vmem:[%s166 + $0x24] sm:$0xf]
      %v185 = vld [vmem:[%s166 + $0x28] sm:$0xf]
      %v186 = vld [vmem:[%s166 + $0x2c] sm:$0xf]
      %v187 = vld [vmem:[%s166 + $0x30] sm:$0xf]
      %v188 = vld [vmem:[%s166 + $0x34] sm:$0xf]
      %v189 = vld [vmem:[%s166 + $0x38] sm:$0xf]
      %v190 = vld [vmem:[%s166 + $0x3c] sm:$0xf]
      %v191 = vld [vmem:[%s166 + $0x40] sm:$0xf]
      %v192 = vld [vmem:[%s166 + $0x44] sm:$0xf]
      %v193 = vld [vmem:[%s166 + $0x48] sm:$0xf]
      %v194 = vld [vmem:[%s166 + $0x4c] sm:$0xf]
      %v195 = vld [vmem:[%s166 + $0x50] sm:$0xf]
      %v196 = vld [vmem:[%s166 + $0x54] sm:$0xf]
      %v197 = vld [vmem:[%s166 + $0x58] sm:$0xf]
      %v198 = vld [vmem:[%s166 + $0x5c] sm:$0xf]
      %v199 = vld [vmem:[%s166 + $0x60] sm:$0xf]
      %v200 = vld [vmem:[%s166 + $0x64] sm:$0xf]
      %v201 = vld [vmem:[%s166 + $0x68] sm:$0xf]
      %v202 = vld [vmem:[%s166 + $0x6c] sm:$0xf]
      %v203 = vld [vmem:[%s166 + $0x70] sm:$0xf]
      %v204 = vld [vmem:[%s166 + $0x74] sm:$0xf]
      %v205 = vld [vmem:[%s166 + $0x78] sm:$0xf]
      %v206 = vld [vmem:[%s166 + $0x7c] sm:$0xf]
      %v207 = vld [vmem:[%s1] sm:$0x3]
      %v208 = vld [vmem:[%s2] sm:$0x1]
      %v210 = vlaneseq
      %v211 = vshrl.u32 %v210, 7
      %v212 = vsub.s32 0, %v211
      %v213 = vrot.slane %v208, %v212
      %v247 = vunpack.c.l.b16 %v175
      %v248 = vunpack.c.l.b16 %v176
      %v249 = vunpack.c.l.b16 %v177
      %v250 = vunpack.c.l.b16 %v178
      %v251 = vunpack.c.l.b16 %v179
      %v252 = vunpack.c.l.b16 %v180
      %v253 = vunpack.c.l.b16 %v181
      %v254 = vunpack.c.l.b16 %v182
      %v255 = vunpack.c.l.b16 %v183
      %v256 = vunpack.c.l.b16 %v184
      %v257 = vunpack.c.l.b16 %v185
      %v258 = vunpack.c.l.b16 %v186
      %v259 = vunpack.c.l.b16 %v187
      %v260 = vunpack.c.l.b16 %v188
      %v261 = vunpack.c.l.b16 %v189
      %v262 = vunpack.c.l.b16 %v190
      %v263 = vunpack.c.l.b16 %v191
      %v264 = vunpack.c.l.b16 %v192
      %v265 = vunpack.c.l.b16 %v193
      %v266 = vunpack.c.l.b16 %v194
      %v267 = vunpack.c.l.b16 %v195
      %v268 = vunpack.c.l.b16 %v196
      %v269 = vunpack.c.l.b16 %v197
      %v270 = vunpack.c.l.b16 %v198
      %v271 = vunpack.c.l.b16 %v199
      %v272 = vunpack.c.l.b16 %v200
      %v273 = vunpack.c.l.b16 %v201
      %v274 = vunpack.c.l.b16 %v202
      %v275 = vunpack.c.l.b16 %v203
      %v276 = vunpack.c.l.b16 %v204
      %v277 = vunpack.c.l.b16 %v205
      %v278 = vunpack.c.l.b16 %v206
      %v279 = vpack.c.b16 %v248, %v247
      %v280 = vpack.c.b16 %v250, %v249
      %v281 = vpack.c.b16 %v252, %v251
      %v282 = vpack.c.b16 %v254, %v253
      %v283 = vpack.c.b16 %v256, %v255
      %v284 = vpack.c.b16 %v258, %v257
      %v285 = vpack.c.b16 %v260, %v259
      %v286 = vpack.c.b16 %v262, %v261
      %v287 = vpack.c.b16 %v264, %v263
      %v288 = vpack.c.b16 %v266, %v265
      %v289 = vpack.c.b16 %v268, %v267
      %v290 = vpack.c.b16 %v270, %v269
      %v291 = vpack.c.b16 %v272, %v271
      %v292 = vpack.c.b16 %v274, %v273
      %v293 = vpack.c.b16 %v276, %v275
      %v294 = vpack.c.b16 %v278, %v277
      %vm295 = vcmask 31744
      %v297 = vsel %vm295, %v279, 0
      %v300 = vsel %vm295, %v280, 0
      %v303 = vsel %vm295, %v281, 0
      %v306 = vsel %vm295, %v282, 0
      %v309 = vsel %vm295, %v283, 0
      %v312 = vsel %vm295, %v284, 0
      %v315 = vsel %vm295, %v285, 0
      %v318 = vsel %vm295, %v286, 0
      %v321 = vsel %vm295, %v287, 0
      %v324 = vsel %vm295, %v288, 0
      %v327 = vsel %vm295, %v289, 0
      %v330 = vsel %vm295, %v290, 0
      %v333 = vsel %vm295, %v291, 0
      %v336 = vsel %vm295, %v292, 0
      %v339 = vsel %vm295, %v293, 0
      %v342 = vsel %vm295, %v294, 0
      %vm344 = vcmask 1041408
      %v346 = vsel %vm344, %v207, 0
      %348 = vmatprep.subr.bf16.mxu0 0
      %349 = vmatpush1.bf16.msra.mxu0 %v346
      %350 = vmatprep.subr.bf16.mxu0 0
      %351 = vmatpush1.bf16.msra.mxu0 0
      %352 = vmatprep.subr.bf16.mxu0 0
      %353 = vmatpush1.bf16.msra.mxu0 0
      %354 = vmatprep.subr.bf16.mxu0 0
      %355 = vmatpush1.bf16.msra.mxu0 0
      %356 = vmatprep.subr.bf16.mxu0 0
      %357 = vmatpush1.bf16.msra.mxu0 0
      %358 = vmatprep.subr.bf16.mxu0 0
      %359 = vmatpush1.bf16.msra.mxu0 0
      %360 = vmatprep.subr.bf16.mxu0 0
      %361 = vmatpush1.bf16.msra.mxu0 0
      %362 = vmatprep.subr.bf16.mxu0 0
      %363 = vmatpush1.bf16.msra.mxu0 0
      %364 = vmatprep.subr.bf16.mxu0 0
      %365 = vmatpush1.bf16.msra.mxu0 0
      %366 = vmatprep.subr.bf16.mxu0 0
      %367 = vmatpush1.bf16.msra.mxu0 0
      %368 = vmatprep.subr.bf16.mxu0 0
      %369 = vmatpush1.bf16.msra.mxu0 0
      %370 = vmatprep.subr.bf16.mxu0 0
      %371 = vmatpush1.bf16.msra.mxu0 0
      %372 = vmatprep.subr.bf16.mxu0 0
      %373 = vmatpush1.bf16.msra.mxu0 0
      %374 = vmatprep.subr.bf16.mxu0 0
      %375 = vmatpush1.bf16.msra.mxu0 0
      %376 = vmatprep.subr.bf16.mxu0 0
      %377 = vmatpush1.bf16.msra.mxu0 0
      %378 = vmatprep.subr.bf16.mxu0 0
      %379 = vmatpush1.bf16.msra.mxu0 0
      %380 = vmatprep.mubr.bf16.mxu0 0
      %381 = vmatmul.mubr.bf16.gmra.mrb[0].mxu0 %v297
      %v382 = vpop.f32.mrb[0].mxu0
      %v383 = vadd.f32 %v213, %v382
      %v384 = vpop.f32.mrb[0].mxu0
      %v385 = vpop.f32.mrb[0].mxu0
      %v386 = vadd.f32 %v213, %v385
      %v387 = vpop.f32.mrb[0].mxu0
      %388 = vmatprep.mubr.bf16.mxu0 0
      %389 = vmatmul.mubr.bf16.gmra.mrb[0].mxu0 %v300
      %v390 = vpop.f32.mrb[0].mxu0
      %v391 = vadd.f32 %v213, %v390
      %v392 = vpop.f32.mrb[0].mxu0
      %v393 = vpop.f32.mrb[0].mxu0
      %v394 = vadd.f32 %v213, %v393
      %v395 = vpop.f32.mrb[0].mxu0
      %396 = vmatprep.mubr.bf16.mxu0 0
      %397 = vmatmul.mubr.bf16.gmra.mrb[0].mxu0 %v303
      %v398 = vpop.f32.mrb[0].mxu0
      %v399 = vadd.f32 %v213, %v398
      %v400 = vpop.f32.mrb[0].mxu0
      %v401 = vpop.f32.mrb[0].mxu0
      %v402 = vadd.f32 %v213, %v401
      %v403 = vpop.f32.mrb[0].mxu0
      %404 = vmatprep.mubr.bf16.mxu0 0
      %405 = vmatmul.mubr.bf16.gmra.mrb[0].mxu0 %v306
      %v406 = vpop.f32.mrb[0].mxu0
      %v407 = vadd.f32 %v213, %v406
      %v408 = vpop.f32.mrb[0].mxu0
      %v409 = vpop.f32.mrb[0].mxu0
      %v410 = vadd.f32 %v213, %v409
      %v411 = vpop.f32.mrb[0].mxu0
      %412 = vmatprep.mubr.bf16.mxu0 0
      %413 = vmatmul.mubr.bf16.gmra.mrb[0].mxu0 %v309
      %v414 = vpop.f32.mrb[0].mxu0
      %v415 = vadd.f32 %v213, %v414
      %v416 = vpop.f32.mrb[0].mxu0
      %v417 = vpop.f32.mrb[0].mxu0
      %v418 = vadd.f32 %v213, %v417
      %v419 = vpop.f32.mrb[0].mxu0
      %420 = vmatprep.mubr.bf16.mxu0 0
      %421 = vmatmul.mubr.bf16.gmra.mrb[0].mxu0 %v312
      %v422 = vpop.f32.mrb[0].mxu0
      %v423 = vadd.f32 %v213, %v422
      %v424 = vpop.f32.mrb[0].mxu0
      %v425 = vpop.f32.mrb[0].mxu0
      %v426 = vadd.f32 %v213, %v425
      %v427 = vpop.f32.mrb[0].mxu0
      %428 = vmatprep.mubr.bf16.mxu0 0
      %429 = vmatmul.mubr.bf16.gmra.mrb[0].mxu0 %v315
      %v430 = vpop.f32.mrb[0].mxu0
      %v431 = vadd.f32 %v213, %v430
      %v432 = vpop.f32.mrb[0].mxu0
      %v433 = vpop.f32.mrb[0].mxu0
      %v434 = vadd.f32 %v213, %v433
      %v435 = vpop.f32.mrb[0].mxu0
      %436 = vmatprep.mubr.bf16.mxu0 0
      %437 = vmatmul.mubr.bf16.gmra.mrb[0].mxu0 %v318
      %v438 = vpop.f32.mrb[0].mxu0
      %v439 = vadd.f32 %v213, %v438
      %v440 = vpop.f32.mrb[0].mxu0
      %v441 = vpop.f32.mrb[0].mxu0
      %v442 = vadd.f32 %v213, %v441
      %v443 = vpop.f32.mrb[0].mxu0
      %444 = vmatprep.mubr.bf16.mxu0 0
      %445 = vmatmul.mubr.bf16.gmra.mrb[0].mxu0 %v321
      %v446 = vpop.f32.mrb[0].mxu0
      %v447 = vadd.f32 %v213, %v446
      %v448 = vpop.f32.mrb[0].mxu0
      %v449 = vpop.f32.mrb[0].mxu0
      %v450 = vadd.f32 %v213, %v449
      %v451 = vpop.f32.mrb[0].mxu0
      %452 = vmatprep.mubr.bf16.mxu0 0
      %453 = vmatmul.mubr.bf16.gmra.mrb[0].mxu0 %v324
      %v454 = vpop.f32.mrb[0].mxu0
      %v455 = vadd.f32 %v213, %v454
      %v456 = vpop.f32.mrb[0].mxu0
      %v457 = vpop.f32.mrb[0].mxu0
      %v458 = vadd.f32 %v213, %v457
      %v459 = vpop.f32.mrb[0].mxu0
      %460 = vmatprep.mubr.bf16.mxu0 0
      %461 = vmatmul.mubr.bf16.gmra.mrb[0].mxu0 %v327
      %v462 = vpop.f32.mrb[0].mxu0
      %v463 = vadd.f32 %v213, %v462
      %v464 = vpop.f32.mrb[0].mxu0
      %v465 = vpop.f32.mrb[0].mxu0
      %v466 = vadd.f32 %v213, %v465
      %v467 = vpop.f32.mrb[0].mxu0
      %468 = vmatprep.mubr.bf16.mxu0 0
      %469 = vmatmul.mubr.bf16.gmra.mrb[0].mxu0 %v330
      %v470 = vpop.f32.mrb[0].mxu0
      %v471 = vadd.f32 %v213, %v470
      %v472 = vpop.f32.mrb[0].mxu0
      %v473 = vpop.f32.mrb[0].mxu0
      %v474 = vadd.f32 %v213, %v473
      %v475 = vpop.f32.mrb[0].mxu0
      %476 = vmatprep.mubr.bf16.mxu0 0
      %477 = vmatmul.mubr.bf16.gmra.mrb[0].mxu0 %v333
      %v478 = vpop.f32.mrb[0].mxu0
      %v479 = vadd.f32 %v213, %v478
      %v480 = vpop.f32.mrb[0].mxu0
      %v481 = vpop.f32.mrb[0].mxu0
      %v482 = vadd.f32 %v213, %v481
      %v483 = vpop.f32.mrb[0].mxu0
      %484 = vmatprep.mubr.bf16.mxu0 0
      %485 = vmatmul.mubr.bf16.gmra.mrb[0].mxu0 %v336
      %v486 = vpop.f32.mrb[0].mxu0
      %v487 = vadd.f32 %v213, %v486
      %v488 = vpop.f32.mrb[0].mxu0
      %v489 = vpop.f32.mrb[0].mxu0
      %v490 = vadd.f32 %v213, %v489
      %v491 = vpop.f32.mrb[0].mxu0
      %492 = vmatprep.mubr.bf16.mxu0 0
      %493 = vmatmul.mubr.bf16.gmra.mrb[0].mxu0 %v339
      %v494 = vpop.f32.mrb[0].mxu0
      %v495 = vadd.f32 %v213, %v494
      %v496 = vpop.f32.mrb[0].mxu0
      %v497 = vpop.f32.mrb[0].mxu0
      %v498 = vadd.f32 %v213, %v497
      %v499 = vpop.f32.mrb[0].mxu0
      %500 = vmatprep.mubr.bf16.mxu0 0
      %501 = vmatmul.mubr.bf16.gmra.mrb[0].mxu0 %v342
      %v502 = vpop.f32.mrb[0].mxu0
      %v503 = vadd.f32 %v213, %v502
      %v504 = vpop.f32.mrb[0].mxu0
      %v505 = vpop.f32.mrb[0].mxu0
      %v506 = vadd.f32 %v213, %v505
      %v507 = vpop.f32.mrb[0].mxu0
      %508 = vdwg.mxu0
      %v509 = vsub.f32 0.0, %v383
      %v510 = vsub.f32 0.0, %v386
      %v511 = vsub.f32 0.0, %v391
      %v512 = vsub.f32 0.0, %v394
      %v513 = vsub.f32 0.0, %v399
      %v514 = vsub.f32 0.0, %v402
      %v515 = vsub.f32 0.0, %v407
      %v516 = vsub.f32 0.0, %v410
      %v517 = vsub.f32 0.0, %v415
      %v518 = vsub.f32 0.0, %v418
      %v519 = vsub.f32 0.0, %v423
      %v520 = vsub.f32 0.0, %v426
      %v521 = vsub.f32 0.0, %v431
      %v522 = vsub.f32 0.0, %v434
      %v523 = vsub.f32 0.0, %v439
      %v524 = vsub.f32 0.0, %v442
      %v525 = vsub.f32 0.0, %v447
      %v526 = vsub.f32 0.0, %v450
      %v527 = vsub.f32 0.0, %v455
      %v528 = vsub.f32 0.0, %v458
      %v529 = vsub.f32 0.0, %v463
      %v530 = vsub.f32 0.0, %v466
      %v531 = vsub.f32 0.0, %v471
      %v532 = vsub.f32 0.0, %v474
      %v533 = vsub.f32 0.0, %v479
      %v534 = vsub.f32 0.0, %v482
      %v535 = vsub.f32 0.0, %v487
      %v536 = vsub.f32 0.0, %v490
      %v537 = vsub.f32 0.0, %v495
      %v538 = vsub.f32 0.0, %v498
      %v539 = vsub.f32 0.0, %v503
      %v540 = vsub.f32 0.0, %v506
      %v541 = vmul.f32 %v509, 1.442695
      %v542 = vpow.pop %v541
      %v543 = vmul.f32 %v510, 1.442695
      %v544 = vpow.pop %v543
      %v545 = vmul.f32 %v511, 1.442695
      %v546 = vpow.pop %v545
      %v547 = vmul.f32 %v512, 1.442695
      %v548 = vpow.pop %v547
      %v549 = vmul.f32 %v513, 1.442695
      %v550 = vpow.pop %v549
      %v551 = vmul.f32 %v514, 1.442695
      %v552 = vpow.pop %v551
      %v553 = vmul.f32 %v515, 1.442695
      %v554 = vpow.pop %v553
      %v555 = vmul.f32 %v516, 1.442695
      %v556 = vpow.pop %v555
      %v557 = vmul.f32 %v517, 1.442695
      %v558 = vpow.pop %v557
      %v559 = vmul.f32 %v518, 1.442695
      %v560 = vpow.pop %v559
      %v561 = vmul.f32 %v519, 1.442695
      %v562 = vpow.pop %v561
      %v563 = vmul.f32 %v520, 1.442695
      %v564 = vpow.pop %v563
      %v565 = vmul.f32 %v521, 1.442695
      %v566 = vpow.pop %v565
      %v567 = vmul.f32 %v522, 1.442695
      %v568 = vpow.pop %v567
      %v569 = vmul.f32 %v523, 1.442695
      %v570 = vpow.pop %v569
      %v571 = vmul.f32 %v524, 1.442695
      %v572 = vpow.pop %v571
      %v573 = vmul.f32 %v525, 1.442695
      %v574 = vpow.pop %v573
      %v575 = vmul.f32 %v526, 1.442695
      %v576 = vpow.pop %v575
      %v577 = vmul.f32 %v527, 1.442695
      %v578 = vpow.pop %v577
      %v579 = vmul.f32 %v528, 1.442695
      %v580 = vpow.pop %v579
      %v581 = vmul.f32 %v529, 1.442695
      %v582 = vpow.pop %v581
      %v583 = vmul.f32 %v530, 1.442695
      %v584 = vpow.pop %v583
      %v585 = vmul.f32 %v531, 1.442695
      %v586 = vpow.pop %v585
      %v587 = vmul.f32 %v532, 1.442695
      %v588 = vpow.pop %v587
      %v589 = vmul.f32 %v533, 1.442695
      %v590 = vpow.pop %v589
      %v591 = vmul.f32 %v534, 1.442695
      %v592 = vpow.pop %v591
      %v593 = vmul.f32 %v535, 1.442695
      %v594 = vpow.pop %v593
      %v595 = vmul.f32 %v536, 1.442695
      %v596 = vpow.pop %v595
      %v597 = vmul.f32 %v537, 1.442695
      %v598 = vpow.pop %v597
      %v599 = vmul.f32 %v538, 1.442695
      %v600 = vpow.pop %v599
      %v601 = vmul.f32 %v539, 1.442695
      %v602 = vpow.pop %v601
      %v603 = vmul.f32 %v540, 1.442695
      %v604 = vpow.pop %v603
      %v605 = vadd.f32 %v542, 1.0
      %v606 = vadd.f32 %v544, 1.0
      %v607 = vadd.f32 %v546, 1.0
      %v608 = vadd.f32 %v548, 1.0
      %v609 = vadd.f32 %v550, 1.0
      %v610 = vadd.f32 %v552, 1.0
      %v611 = vadd.f32 %v554, 1.0
      %v612 = vadd.f32 %v556, 1.0
      %v613 = vadd.f32 %v558, 1.0
      %v614 = vadd.f32 %v560, 1.0
      %v615 = vadd.f32 %v562, 1.0
      %v616 = vadd.f32 %v564, 1.0
      %v617 = vadd.f32 %v566, 1.0
      %v618 = vadd.f32 %v568, 1.0
      %v619 = vadd.f32 %v570, 1.0
      %v620 = vadd.f32 %v572, 1.0
      %v621 = vadd.f32 %v574, 1.0
      %v622 = vadd.f32 %v576, 1.0
      %v623 = vadd.f32 %v578, 1.0
      %v624 = vadd.f32 %v580, 1.0
      %v625 = vadd.f32 %v582, 1.0
      %v626 = vadd.f32 %v584, 1.0
      %v627 = vadd.f32 %v586, 1.0
      %v628 = vadd.f32 %v588, 1.0
      %v629 = vadd.f32 %v590, 1.0
      %v630 = vadd.f32 %v592, 1.0
      %v631 = vadd.f32 %v594, 1.0
      %v632 = vadd.f32 %v596, 1.0
      %v633 = vadd.f32 %v598, 1.0
      %v634 = vadd.f32 %v600, 1.0
      %v635 = vadd.f32 %v602, 1.0
      %v636 = vadd.f32 %v604, 1.0
      %v637 = vrcp.pop %v605
      %v638 = vrcp.pop %v606
      %v639 = vrcp.pop %v607
      %v640 = vrcp.pop %v608
      %v641 = vrcp.pop %v609
      %v642 = vrcp.pop %v610
      %v643 = vrcp.pop %v611
      %v644 = vrcp.pop %v612
      %v645 = vrcp.pop %v613
      %v646 = vrcp.pop %v614
      %v647 = vrcp.pop %v615
      %v648 = vrcp.pop %v616
      %v649 = vrcp.pop %v617
      %v650 = vrcp.pop %v618
      %v651 = vrcp.pop %v619
      %v652 = vrcp.pop %v620
      %v653 = vrcp.pop %v621
      %v654 = vrcp.pop %v622
      %v655 = vrcp.pop %v623
      %v656 = vrcp.pop %v624
      %v657 = vrcp.pop %v625
      %v658 = vrcp.pop %v626
      %v659 = vrcp.pop %v627
      %v660 = vrcp.pop %v628
      %v661 = vrcp.pop %v629
      %v662 = vrcp.pop %v630
      %v663 = vrcp.pop %v631
      %v664 = vrcp.pop %v632
      %v665 = vrcp.pop %v633
      %v666 = vrcp.pop %v634
      %v667 = vrcp.pop %v635
      %v668 = vrcp.pop %v636
      %v669 = vmul.f32 %v383, %v637
      %v670 = vmul.f32 %v386, %v638
      %v671 = vmul.f32 %v391, %v639
      %v672 = vmul.f32 %v394, %v640
      %v673 = vmul.f32 %v399, %v641
      %v674 = vmul.f32 %v402, %v642
      %v675 = vmul.f32 %v407, %v643
      %v676 = vmul.f32 %v410, %v644
      %v677 = vmul.f32 %v415, %v645
      %v678 = vmul.f32 %v418, %v646
      %v679 = vmul.f32 %v423, %v647
      %v680 = vmul.f32 %v426, %v648
      %v681 = vmul.f32 %v431, %v649
      %v682 = vmul.f32 %v434, %v650
      %v683 = vmul.f32 %v439, %v651
      %v684 = vmul.f32 %v442, %v652
      %v685 = vmul.f32 %v447, %v653
      %v686 = vmul.f32 %v450, %v654
      %v687 = vmul.f32 %v455, %v655
      %v688 = vmul.f32 %v458, %v656
      %v689 = vmul.f32 %v463, %v657
      %v690 = vmul.f32 %v466, %v658
      %v691 = vmul.f32 %v471, %v659
      %v692 = vmul.f32 %v474, %v660
      %v693 = vmul.f32 %v479, %v661
      %v694 = vmul.f32 %v482, %v662
      %v695 = vmul.f32 %v487, %v663
      %v696 = vmul.f32 %v490, %v664
      %v697 = vmul.f32 %v495, %v665
      %v698 = vmul.f32 %v498, %v666
      %v699 = vmul.f32 %v503, %v667
      %v700 = vmul.f32 %v506, %v668
      %v701 = vpack.c.bf16 %v670, %v669
      %v702 = vpack.c.bf16 %v672, %v671
      %v703 = vpack.c.bf16 %v674, %v673
      %v704 = vpack.c.bf16 %v676, %v675
      %v705 = vpack.c.bf16 %v678, %v677
      %v706 = vpack.c.bf16 %v680, %v679
      %v707 = vpack.c.bf16 %v682, %v681
      %v708 = vpack.c.bf16 %v684, %v683
      %v709 = vpack.c.bf16 %v686, %v685
      %v710 = vpack.c.bf16 %v688, %v687
      %v711 = vpack.c.bf16 %v690, %v689
      %v712 = vpack.c.bf16 %v692, %v691
      %v713 = vpack.c.bf16 %v694, %v693
      %v714 = vpack.c.bf16 %v696, %v695
      %v715 = vpack.c.bf16 %v698, %v697
      %v716 = vpack.c.bf16 %v700, %v699
      %v733 = vunpack.c.l.b16 %v701
      %v734 = vunpack.c.h.b16 %v701
      %v735 = vunpack.c.l.b16 %v702
      %v736 = vunpack.c.h.b16 %v702
      %v737 = vunpack.c.l.b16 %v703
      %v738 = vunpack.c.h.b16 %v703
      %v739 = vunpack.c.l.b16 %v704
      %v740 = vunpack.c.h.b16 %v704
      %v741 = vunpack.c.l.b16 %v705
      %v742 = vunpack.c.h.b16 %v705
      %v743 = vunpack.c.l.b16 %v706
      %v744 = vunpack.c.h.b16 %v706
      %v745 = vunpack.c.l.b16 %v707
      %v746 = vunpack.c.h.b16 %v707
      %v747 = vunpack.c.l.b16 %v708
      %v748 = vunpack.c.h.b16 %v708
      %v749 = vunpack.c.l.b16 %v709
      %v750 = vunpack.c.h.b16 %v709
      %v751 = vunpack.c.l.b16 %v710
      %v752 = vunpack.c.h.b16 %v710
      %v753 = vunpack.c.l.b16 %v711
      %v754 = vunpack.c.h.b16 %v711
      %v755 = vunpack.c.l.b16 %v712
      %v756 = vunpack.c.h.b16 %v712
      %v757 = vunpack.c.l.b16 %v713
      %v758 = vunpack.c.h.b16 %v713
      %v759 = vunpack.c.l.b16 %v714
      %v760 = vunpack.c.h.b16 %v714
      %v761 = vunpack.c.l.b16 %v715
      %v762 = vunpack.c.h.b16 %v715
      %v763 = vunpack.c.l.b16 %v716
      %v764 = vunpack.c.h.b16 %v716
      %v765 = vpack.c.b16 %v733, %v733
      %v766 = vpack.c.b16 %v734, %v734
      %v767 = vpack.c.b16 %v735, %v735
      %v768 = vpack.c.b16 %v736, %v736
      %v769 = vpack.c.b16 %v737, %v737
      %v770 = vpack.c.b16 %v738, %v738
      %v771 = vpack.c.b16 %v739, %v739
      %v772 = vpack.c.b16 %v740, %v740
      %v773 = vpack.c.b16 %v741, %v741
      %v774 = vpack.c.b16 %v742, %v742
      %v775 = vpack.c.b16 %v743, %v743
      %v776 = vpack.c.b16 %v744, %v744
      %v777 = vpack.c.b16 %v745, %v745
      %v778 = vpack.c.b16 %v746, %v746
      %v779 = vpack.c.b16 %v747, %v747
      %v780 = vpack.c.b16 %v748, %v748
      %v781 = vpack.c.b16 %v749, %v749
      %v782 = vpack.c.b16 %v750, %v750
      %v783 = vpack.c.b16 %v751, %v751
      %v784 = vpack.c.b16 %v752, %v752
      %v785 = vpack.c.b16 %v753, %v753
      %v786 = vpack.c.b16 %v754, %v754
      %v787 = vpack.c.b16 %v755, %v755
      %v788 = vpack.c.b16 %v756, %v756
      %v789 = vpack.c.b16 %v757, %v757
      %v790 = vpack.c.b16 %v758, %v758
      %v791 = vpack.c.b16 %v759, %v759
      %v792 = vpack.c.b16 %v760, %v760
      %v793 = vpack.c.b16 %v761, %v761
      %v794 = vpack.c.b16 %v762, %v762
      %v795 = vpack.c.b16 %v763, %v763
      %v796 = vpack.c.b16 %v764, %v764
      %vm829 = vcmask 11264
      %830 = vst.msk [vmem:[%s172] sm:$0xf] %vm829, %v765
      %831 = vst.msk [vmem:[%s172 + $0x4] sm:$0xf] %vm829, %v766
      %832 = vst.msk [vmem:[%s172 + $0x8] sm:$0xf] %vm829, %v767
      %833 = vst.msk [vmem:[%s172 + $0xc] sm:$0xf] %vm829, %v768
      %834 = vst.msk [vmem:[%s172 + $0x10] sm:$0xf] %vm829, %v769
      %835 = vst.msk [vmem:[%s172 + $0x14] sm:$0xf] %vm829, %v770
      %836 = vst.msk [vmem:[%s172 + $0x18] sm:$0xf] %vm829, %v771
      %837 = vst.msk [vmem:[%s172 + $0x1c] sm:$0xf] %vm829, %v772
      %838 = vst.msk [vmem:[%s172 + $0x20] sm:$0xf] %vm829, %v773
      %839 = vst.msk [vmem:[%s172 + $0x24] sm:$0xf] %vm829, %v774
      %840 = vst.msk [vmem:[%s172 + $0x28] sm:$0xf] %vm829, %v775
      %841 = vst.msk [vmem:[%s172 + $0x2c] sm:$0xf] %vm829, %v776
      %842 = vst.msk [vmem:[%s172 + $0x30] sm:$0xf] %vm829, %v777
      %843 = vst.msk [vmem:[%s172 + $0x34] sm:$0xf] %vm829, %v778
      %844 = vst.msk [vmem:[%s172 + $0x38] sm:$0xf] %vm829, %v779
      %845 = vst.msk [vmem:[%s172 + $0x3c] sm:$0xf] %vm829, %v780
      %846 = vst.msk [vmem:[%s172 + $0x40] sm:$0xf] %vm829, %v781
      %847 = vst.msk [vmem:[%s172 + $0x44] sm:$0xf] %vm829, %v782
      %848 = vst.msk [vmem:[%s172 + $0x48] sm:$0xf] %vm829, %v783
      %849 = vst.msk [vmem:[%s172 + $0x4c] sm:$0xf] %vm829, %v784
      %850 = vst.msk [vmem:[%s172 + $0x50] sm:$0xf] %vm829, %v785
      %851 = vst.msk [vmem:[%s172 + $0x54] sm:$0xf] %vm829, %v786
      %852 = vst.msk [vmem:[%s172 + $0x58] sm:$0xf] %vm829, %v787
      %853 = vst.msk [vmem:[%s172 + $0x5c] sm:$0xf] %vm829, %v788
      %854 = vst.msk [vmem:[%s172 + $0x60] sm:$0xf] %vm829, %v789
      %855 = vst.msk [vmem:[%s172 + $0x64] sm:$0xf] %vm829, %v790
      %856 = vst.msk [vmem:[%s172 + $0x68] sm:$0xf] %vm829, %v791
      %857 = vst.msk [vmem:[%s172 + $0x6c] sm:$0xf] %vm829, %v792
      %858 = vst.msk [vmem:[%s172 + $0x70] sm:$0xf] %vm829, %v793
      %859 = vst.msk [vmem:[%s172 + $0x74] sm:$0xf] %vm829, %v794
      %860 = vst.msk [vmem:[%s172 + $0x78] sm:$0xf] %vm829, %v795
      %861 = vst.msk [vmem:[%s172 + $0x7c] sm:$0xf] %vm829, %v796
      %s862 = smul.u32 32, %s14
      %p863 = scmp.lt.s32.totalorder %s862, 63
      %s864 = scalar_select %p863, %s862, 63
      %s865 = smul.addr %s864, 4
      %s866 = scalar_lea.vmem %s3, %s865
      // Predicated region
      $region33: #{tpu_custom_call.1} parent=31 // pred_check
        %p867 = pneg %p100
      $region34: #{tpu_custom_call.1} parent=31 // pred_check_branch
        %869 = sbr.rel (%p867) target = $region36
      $region35: #{tpu_custom_call.1} parent=31 // pred_region
        %s870 = smul.u32 32, %s14
      $region36: #{tpu_custom_call.1} parent=31 // pred_fallthru
        _
    $region32: #{tpu_custom_call.1} parent=5 // pred_fallthru
      _
    %p871 = scmp.le.s32.totalorder 2, %s9
    // Predicated region
    $region37: #{tpu_custom_call.1} parent=5 // pred_check
      %p872 = pneg %p871
    $region38: #{tpu_custom_call.1} parent=5 // pred_check_branch
      %874 = sbr.rel (%p872) target = $region40
    $region39: #{tpu_custom_call.1} parent=5 // pred_region
      %s875 = ssub.s32 %s9, 2
      // Predicated region
      $region41: #{tpu_custom_call.1} parent=39 // pred_check
        %p876 = pneg %p106
      $region42: #{tpu_custom_call.1} parent=39 // pred_check_branch
        %878 = sbr.rel (%p876) target = $region44
      $region43: #{tpu_custom_call.1} parent=39 // pred_region
        %s879 = smul.u32 32, %s15
        %p880 = scmp.lt.s32.totalorder %s879, 63
        %s881 = scalar_select %p880, %s879, 63
        %s882 = smul.addr %s881, 4
        %s883 = scalar_lea.vmem %s3, %s882
      $region44: #{tpu_custom_call.1} parent=39 // pred_fallthru
        _
    $region40: #{tpu_custom_call.1} parent=5 // pred_fallthru
      _
  $region6: #{tpu_custom_call.1} parent=0 // loop_footer
    %s13 = sadd.s32 1, %s9
  $region7: #{tpu_custom_call.1} parent=0 // loop_footer_branch
    %8 = sbr.rel target = $region3
  $region8: #{tpu_custom_call.1} parent=0 // loop_exit
    _

</llo_original>
